<compile_context>
chip_gen: v7x
topology: tpu7x:2x2x1
jax: 0.10.0
libtpu: 0.0.40
codegen_flags: <defaults>
</compile_context>

<pallas_src>
from math import sqrt

import jax
import jax.numpy as jnp
from jax import lax
from jax.experimental import pallas as pl
from jax.experimental.pallas import tpu as pltpu


def _round_up(x, m):
    return ((x + m - 1) // m) * m


def _sublane_min(dtype):
    # Minimum second-to-last block dim for a packed dtype: 8 (f32), 16 (bf16), 32 (8-bit).
    bits = jnp.dtype(dtype).itemsize * 8
    return max(8, 256 // bits)


def _linear_kernel_direct(x_ref, w_ref, o_ref):
    # o_ref's block index is constant over k -> it is the VMEM-resident f32 accumulator.
    @pl.when(pl.program_id(2) == 0)
    def _():
        o_ref[...] = jnp.zeros_like(o_ref)

    # Contract the last (lane) dim of both operands: x[m,k] * w[n,k] -> [m,n].
    o_ref[...] += lax.dot_general(
        x_ref[...], w_ref[...],
        dimension_numbers=(((1,), (1,)), ((), ())),
        preferred_element_type=jnp.float32,
    )


def _linear_kernel_acc(x_ref, w_ref, o_ref, acc_ref):
    # Used only when the output dtype is not f32 (e.g. bf16 outputs).
    @pl.when(pl.program_id(2) == 0)
    def _():
        acc_ref[...] = jnp.zeros_like(acc_ref)

    acc_ref[...] += lax.dot_general(
        x_ref[...], w_ref[...],
        dimension_numbers=(((1,), (1,)), ((), ())),
        preferred_element_type=jnp.float32,
    )

    @pl.when(pl.program_id(2) == pl.num_programs(2) - 1)
    def _():
        o_ref[...] = acc_ref[...].astype(o_ref.dtype)


def _matmul_pallas(x_p, w_p, out_dtype, tm, tn, tk):
    """x_p: (Mp, Kp), w_p: (Np, Kp) — both already padded & cast. Returns (Mp, Np)."""
    Mp, Kp = x_p.shape
    Np, _ = w_p.shape
    grid = (Mp // tm, Np // tn, Kp // tk)

    direct = jnp.dtype(out_dtype) == jnp.dtype(jnp.float32)
    cbytes = jnp.dtype(x_p.dtype).itemsize
    obytes = jnp.dtype(out_dtype).itemsize

    # Deeper input pipelining when the reduction is many small k tiles.
    in_bufs = 3 if (grid[2] >= 4 and tk <= 256) else 2

    def _in_spec(block_shape, index_map):
        if in_bufs == 3:
            return pl.BlockSpec(block_shape, index_map, pipeline_mode=pl.Buffered(3))
        return pl.BlockSpec(block_shape, index_map)

    in_specs = [
        _in_spec((tm, tk), lambda i, j, k: (i, k)),   # x tile
        _in_spec((tn, tk), lambda i, j, k: (j, k)),   # weight tile
    ]
    out_spec = pl.BlockSpec((tm, tn), lambda i, j, k: (i, j))

    kernel = _linear_kernel_direct if direct else _linear_kernel_acc
    scratch = [] if direct else [pltpu.VMEM((tm, tn), jnp.float32)]

    # Size scoped VMEM to the actual footprint (double/triple-buffered inputs,
    # double-buffered output, optional f32 scratch) + headroom; stays < v7x's 64 MiB
    # and raises v5e's 16 MiB default when tiles are large.
    vmem_est = (in_bufs * (tm * tk + tn * tk) * cbytes
                + 2 * tm * tn * obytes
                + (0 if direct else tm * tn * 4))
    vmem_limit = min(max(int(vmem_est * 1.3) + (4 << 20), 24 << 20), 50 << 20)

    cost = pl.CostEstimate(
        flops=2 * Mp * Np * Kp,
        transcendentals=0,
        bytes_accessed=(Mp * Kp + Np * Kp) * cbytes + Mp * Np * obytes,
    )

    return pl.pallas_call(
        kernel,
        out_shape=jax.ShapeDtypeStruct((Mp, Np), out_dtype),
        grid_spec=pltpu.PrefetchScalarGridSpec(
            num_scalar_prefetch=0,
            grid=grid,
            in_specs=in_specs,
            out_specs=out_spec,
            scratch_shapes=scratch,
        ),
        compiler_params=pltpu.CompilerParams(
            dimension_semantics=("parallel", "parallel", "arbitrary"),
            vmem_limit_bytes=vmem_limit,
        ),
        cost_estimate=cost,
    )(x_p, w_p)


def make_linear(weight, *, compute_dtype=jnp.bfloat16, out_dtype=None,
                tm=512, tn=1024, tk=2048):
    """Prepare a PyTorch-convention (d_out, d_in) weight once (pad + cast) and
    return forward(x: (..., d_in)) -> (..., d_out)."""
    d_out, d_in = weight.shape
    tn = min(tn, _round_up(d_out, 128))
    tk = min(tk, _round_up(d_in, 128))
    Np = _round_up(d_out, tn)
    Kp = _round_up(d_in, tk)

    w_p = weight
    if (Np, Kp) != (d_out, d_in):
        w_p = jnp.pad(weight, ((0, Np - d_out), (0, Kp - d_in)))
    w_p = jnp.asarray(w_p, dtype=compute_dtype)   # one-time cast, not per call

    sub = _sublane_min(compute_dtype)

    def forward(x):
        odt = jnp.dtype(out_dtype) if out_dtype is not None else x.dtype
        orig_shape = x.shape
        x2d = x.reshape(-1, d_in)
        M = x2d.shape[0]

        tm_eff = min(tm, _round_up(M, sub))
        Mp = _round_up(M, tm_eff)

        x_p = x2d
        if (Mp, Kp) != (M, d_in):
            x_p = jnp.pad(x2d, ((0, Mp - M), (0, Kp - d_in)))
        x_p = x_p.astype(compute_dtype)

        out = _matmul_pallas(x_p, w_p, odt, tm_eff, tn, tk)
        return out[:M, :d_out].reshape(*orig_shape[:-1], d_out)

    return forward


def linear_pallas(x, weight, **kw):
    # One-shot convenience (re-prepares W each call; prefer make_linear for a static weight).
    return make_linear(weight, **kw)(x)


def trunc_normal_init(key, shape, std):
    # Matches the reference: standard normal, scaled by std, clamped to [-3, 3].
    v = jax.random.normal(key, shape, dtype=jnp.float32) * std
    return jnp.clip(v, -3.0, 3.0)


if __name__ == "__main__":
    batch, seq = 2, 8
    d_in, d_out = 32, 64

    key = jax.random.PRNGKey(0)
    kx, kw = jax.random.split(key, 2)

    x = jax.random.normal(kx, (batch, seq, d_in), dtype=jnp.float32)
    w = trunc_normal_init(kw, (d_out, d_in), std=1.0 / sqrt(d_in))  # Linear(d_in, d_out)

    ref = jnp.einsum("...i,oi->...o", x, w)

    # Default path: bf16 MXU operands, f32 accumulation, f32 output.
    fwd_bf16 = make_linear(w, compute_dtype=jnp.bfloat16)
    out_bf16 = jax.block_until_ready(fwd_bf16(x))
    assert out_bf16.shape == (batch, seq, d_out)
    assert out_bf16.dtype == x.dtype
    assert jnp.allclose(out_bf16, ref, atol=8e-2, rtol=8e-2), "bf16 path mismatch vs reference"

    # Exact path: f32 end-to-end, tight tolerance.
    fwd_f32 = make_linear(w, compute_dtype=jnp.float32)
    out_f32 = jax.block_until_ready(fwd_f32(x))
    assert jnp.allclose(out_f32, ref, atol=1e-5, rtol=1e-5), "f32 path mismatch vs reference"

    print("KERNEL_OK")
</pallas_src>

<mosaic_0001>
module attributes {stable_mosaic.version = 11 : i64} {
  func.func @_linear_kernel_direct(%arg0: i32, %arg1: i32, %arg2: i32, %arg3: memref<16x128xbf16, #tpu.memory_space<vmem>>, %arg4: memref<128x128xbf16, #tpu.memory_space<vmem>>, %arg5: memref<16x128xf32, #tpu.memory_space<vmem>>) attributes {dimension_semantics = [#tpu.dimension_semantics<parallel>, #tpu.dimension_semantics<parallel>, #tpu.dimension_semantics<arbitrary>], iteration_bounds = array<i64: 1, 1, 1>, scalar_prefetch = 0 : i64, scratch_operands = 0 : i64, tpu.core_type = #tpu.core_type<tc>, window_params = [{transform_indices = @transform_0, window_bounds = array<i64: 16, 128>}, {transform_indices = @transform_1, window_bounds = array<i64: 128, 128>}, {transform_indices = @transform_2, window_bounds = array<i64: 16, 128>}]} {
    %c0_i32 = arith.constant 0 : i32
    %0 = arith.cmpi eq, %arg2, %c0_i32 : i32
    %1 = arith.extui %0 : i1 to i32
    %c0_i32_0 = arith.constant 0 : i32
    %2 = arith.cmpi ne, %1, %c0_i32_0 : i32
    scf.if %2 {
      %cst_8 = arith.constant 0.000000e+00 : f32
      %9 = vector.broadcast %cst_8 : f32 to vector<16x128xf32>
      %c0_9 = arith.constant 0 : index
      %c0_10 = arith.constant 0 : index
      %10 = vector.load %arg5[%c0_9, %c0_10] : memref<16x128xf32, #tpu.memory_space<vmem>>, vector<16x128xf32>
      tpu.vector_store %arg5[%c0_9, %c0_10], %9 {strides = array<i32>} : memref<16x128xf32, #tpu.memory_space<vmem>>, vector<16x128xf32>,
    } else {
    }
    %c0 = arith.constant 0 : index
    %c0_1 = arith.constant 0 : index
    %3 = vector.load %arg5[%c0, %c0_1] : memref<16x128xf32, #tpu.memory_space<vmem>>, vector<16x128xf32>
    %c0_2 = arith.constant 0 : index
    %c0_3 = arith.constant 0 : index
    %4 = vector.load %arg3[%c0_2, %c0_3] : memref<16x128xbf16, #tpu.memory_space<vmem>>, vector<16x128xbf16>
    %c0_4 = arith.constant 0 : index
    %c0_5 = arith.constant 0 : index
    %5 = vector.load %arg4[%c0_4, %c0_5] : memref<128x128xbf16, #tpu.memory_space<vmem>>, vector<128x128xbf16>
    %cst = arith.constant dense<0.000000e+00> : vector<16x128xf32>
    %6 = tpu.matmul %4, %5, %cst {dimension_numbers = #tpu.dot_dimension_numbers<[1], [1], [0], [0], [0, 0, 1, 0], [], []>} : vector<16x128xbf16>, vector<128x128xbf16>, vector<16x128xf32> -> vector<16x128xf32>
    %7 = arith.addf %3, %6 : vector<16x128xf32>
    %c0_6 = arith.constant 0 : index
    %c0_7 = arith.constant 0 : index
    %8 = vector.load %arg5[%c0_6, %c0_7] : memref<16x128xf32, #tpu.memory_space<vmem>>, vector<16x128xf32>
    tpu.vector_store %arg5[%c0_6, %c0_7], %7 {strides = array<i32>} : memref<16x128xf32, #tpu.memory_space<vmem>>, vector<16x128xf32>,
    return
  }
  func.func @transform_0(%arg0: i32, %arg1: i32, %arg2: i32) -> (i32, i32) {
    %c0_i32 = arith.constant 0 : i32
    return %arg0, %arg2 : i32, i32
  }
  func.func @transform_1(%arg0: i32, %arg1: i32, %arg2: i32) -> (i32, i32) {
    %c0_i32 = arith.constant 0 : i32
    return %arg1, %arg2 : i32, i32
  }
  func.func @transform_2(%arg0: i32, %arg1: i32, %arg2: i32) -> (i32, i32) {
    %c0_i32 = arith.constant 0 : i32
    return %arg0, %arg1 : i32, i32
  }
}

</mosaic_0001>

<llo_original>
// kernel: tpu_custom_call.1
$region0: #{tpu_custom_call.1}
  #allocation0 [shape = 'u32[]', space=smem, size = 0x4, offset = 0x4, fixed_abs, tag = 'smem constant byte address 0x4 - core index']
  #allocation1 [shape = 'u32[144,128]{1,0:T(1,128)}', space=vmem, size = 0x12000, scoped, tag = 'internal scratch']
  %s0 = inlined_call_operand.hbm [shape: bf16[16,128], index: 0, kind: input, shape index: {}]
  %s1 = inlined_call_operand.hbm [shape: bf16[128,128], index: 1, kind: input, shape index: {}]
  %s2 = inlined_call_operand.hbm [shape: f32[16,128], index: 2, kind: output, shape index: {}]
  %s3 = sld [smem:[#allocation0]]
  $region30: #{tpu_custom_call.1} parent=0
    _
  %s5 = ssub.s32 1, %s3
  %s6 = scalar_select 0, %s5, %s3
  $region1: #{tpu_custom_call.1} parent=0
    #allocation2 [shape = 'u8[4096]{0}', space=vmem, size = 0x1000, scoped, tag = 'input window, operand 0, single buffered']
    #allocation3 [shape = 's32[1]{0}', space=sflag, size = 0x4, scoped, tag = 'scoped memory for tpu_custom_call.1']
    #allocation4 [shape = 's32[1]{0}', space=sflag, size = 0x4, scoped, tag = 'scoped memory for tpu_custom_call.1']
    #allocation5 [shape = 'u8[32768]{0}', space=vmem, size = 0x8000, scoped, tag = 'input window, operand 1, single buffered']
    #allocation6 [shape = 's32[1]{0}', space=sflag, size = 0x4, scoped, tag = 'scoped memory for tpu_custom_call.1']
    #allocation7 [shape = 'u8[8192]{0}', space=vmem, size = 0x2000, scoped, tag = 'output window, operand 0, single buffered']
    %7 = vsyncpa [#allocation3], 0
    %8 = vsyncpa [#allocation6], 0
    %9 = vsyncpa [#allocation4], 0
    // Predicated region
    $region2: #{tpu_custom_call.1} parent=1 // pred_check
      _
    $region3: #{tpu_custom_call.1} parent=1 // pred_check_branch
      %11 = sbr.rel (0) target = $region5
    $region4: #{tpu_custom_call.1} parent=1 // pred_region
      %s13 = ssub.s32 128, 128
      %14 = vsyncadd [#allocation3], %s13
      %s15 = sshll.u32 [#allocation2], 4
      %s16 = int_to_ptr.vmem [resolvable:$true] %s15
      %21 = dma.hbm_to_vmem [thread:$0]  %s0, 128, %s16, [#allocation3], 64, 64, 4
    $region5: #{tpu_custom_call.1} parent=1 // pred_fallthru
      _
    // Predicated region
    $region6: #{tpu_custom_call.1} parent=1 // pred_check
      _
    $region7: #{tpu_custom_call.1} parent=1 // pred_check_branch
      %23 = sbr.rel (0) target = $region9
    $region8: #{tpu_custom_call.1} parent=1 // pred_region
      %s25 = ssub.s32 1024, 1024
      %26 = vsyncadd [#allocation6], %s25
      %s27 = sshll.u32 [#allocation5], 4
      %s28 = int_to_ptr.vmem [resolvable:$true] %s27
      %33 = dma.hbm_to_vmem [thread:$0]  %s1, 1024, %s28, [#allocation6], 64, 64, 4
    $region9: #{tpu_custom_call.1} parent=1 // pred_fallthru
      _
    // Predicated region
    $region10: #{tpu_custom_call.1} parent=1 // pred_check
      _
    $region11: #{tpu_custom_call.1} parent=1 // pred_check_branch
      %35 = sbr.rel (0) target = $region13
    $region12: #{tpu_custom_call.1} parent=1 // pred_region
      %36 = dma.done [#allocation3], 128
    $region13: #{tpu_custom_call.1} parent=1 // pred_fallthru
      _
    // Predicated region
    $region14: #{tpu_custom_call.1} parent=1 // pred_check
      _
    $region15: #{tpu_custom_call.1} parent=1 // pred_check_branch
      %38 = sbr.rel (0) target = $region17
    $region16: #{tpu_custom_call.1} parent=1 // pred_region
      %39 = dma.done [#allocation6], 1024
    $region17: #{tpu_custom_call.1} parent=1 // pred_fallthru
      _
    %p41 = scmp.eq.s32.totalorder 0, 0
    // Predicated region
    $region18: #{tpu_custom_call.1} parent=1 // pred_check
      %p42 = pneg %p41
    $region19: #{tpu_custom_call.1} parent=1 // pred_check_branch
      %44 = sbr.rel (%p42) target = $region21
    $region20: #{tpu_custom_call.1} parent=1 // pred_region
      %45 = vst [vmem:[#allocation7] sm:$0xff] 0.0
      %46 = vst [vmem:[#allocation7 + $0x8] sm:$0xff] 0.0
    $region21: #{tpu_custom_call.1} parent=1 // pred_fallthru
      _
    %v47 = vld [vmem:[#allocation7] sm:$0xff]
    %v48 = vld [vmem:[#allocation7 + $0x8] sm:$0xff]
    %v49 = vld [vmem:[#allocation2] sm:$0xf]
    %v50 = vld [vmem:[#allocation2 + $0x4] sm:$0xf]
    %v51 = vld [vmem:[#allocation5] sm:$0xf]
    %v52 = vld [vmem:[#allocation5 + $0x4] sm:$0xf]
    %v53 = vld [vmem:[#allocation5 + $0x8] sm:$0xf]
    %v54 = vld [vmem:[#allocation5 + $0xc] sm:$0xf]
    %v55 = vld [vmem:[#allocation5 + $0x10] sm:$0xf]
    %v56 = vld [vmem:[#allocation5 + $0x14] sm:$0xf]
    %v57 = vld [vmem:[#allocation5 + $0x18] sm:$0xf]
    %v58 = vld [vmem:[#allocation5 + $0x1c] sm:$0xf]
    %v59 = vld [vmem:[#allocation5 + $0x20] sm:$0xf]
    %v60 = vld [vmem:[#allocation5 + $0x24] sm:$0xf]
    %v61 = vld [vmem:[#allocation5 + $0x28] sm:$0xf]
    %v62 = vld [vmem:[#allocation5 + $0x2c] sm:$0xf]
    %v63 = vld [vmem:[#allocation5 + $0x30] sm:$0xf]
    %v64 = vld [vmem:[#allocation5 + $0x34] sm:$0xf]
    %v65 = vld [vmem:[#allocation5 + $0x38] sm:$0xf]
    %v66 = vld [vmem:[#allocation5 + $0x3c] sm:$0xf]
    %v69 = vunpack.c.l.b16 %v49
    %v70 = vunpack.c.l.b16 %v50
    %v71 = vpack.c.b16 %v70, %v69
    %v89 = vunpack.c.l.b16 %v51
    %v90 = vunpack.c.l.b16 %v52
    %v91 = vunpack.c.l.b16 %v53
    %v92 = vunpack.c.l.b16 %v54
    %v93 = vunpack.c.l.b16 %v55
    %v94 = vunpack.c.l.b16 %v56
    %v95 = vunpack.c.l.b16 %v57
    %v96 = vunpack.c.l.b16 %v58
    %v97 = vunpack.c.l.b16 %v59
    %v98 = vunpack.c.l.b16 %v60
    %v99 = vunpack.c.l.b16 %v61
    %v100 = vunpack.c.l.b16 %v62
    %v101 = vunpack.c.l.b16 %v63
    %v102 = vunpack.c.l.b16 %v64
    %v103 = vunpack.c.l.b16 %v65
    %v104 = vunpack.c.l.b16 %v66
    %v105 = vpack.c.b16 %v90, %v89
    %v106 = vpack.c.b16 %v92, %v91
    %v107 = vpack.c.b16 %v94, %v93
    %v108 = vpack.c.b16 %v96, %v95
    %v109 = vpack.c.b16 %v98, %v97
    %v110 = vpack.c.b16 %v100, %v99
    %v111 = vpack.c.b16 %v102, %v101
    %v112 = vpack.c.b16 %v104, %v103
    %121 = vmatprep.subr.bf16.mxu0 0
    %122 = vmatpush1.bf16.xpose.msra.mxu0 %v105
    %123 = vmatprep.subr.bf16.mxu0 0
    %124 = vmatpush1.bf16.xpose.msra.mxu0 %v106
    %125 = vmatprep.subr.bf16.mxu0 0
    %126 = vmatpush1.bf16.xpose.msra.mxu0 %v107
    %127 = vmatprep.subr.bf16.mxu0 0
    %128 = vmatpush1.bf16.xpose.msra.mxu0 %v108
    %129 = vmatprep.subr.bf16.mxu0 0
    %130 = vmatpush1.bf16.xpose.msra.mxu0 %v109
    %131 = vmatprep.subr.bf16.mxu0 0
    %132 = vmatpush1.bf16.xpose.msra.mxu0 %v110
    %133 = vmatprep.subr.bf16.mxu0 0
    %134 = vmatpush1.bf16.xpose.msra.mxu0 %v111
    %135 = vmatprep.subr.bf16.mxu0 0
    %136 = vmatpush1.bf16.xpose.msra.mxu0 %v112
    %137 = vmatprep.subr.bf16.mxu0 0
    %138 = vmatpush1.bf16.xpose.msra.mxu0 0
    %139 = vmatprep.subr.bf16.mxu0 0
    %140 = vmatpush1.bf16.xpose.msra.mxu0 0
    %141 = vmatprep.subr.bf16.mxu0 0
    %142 = vmatpush1.bf16.xpose.msra.mxu0 0
    %143 = vmatprep.subr.bf16.mxu0 0
    %144 = vmatpush1.bf16.xpose.msra.mxu0 0
    %145 = vmatprep.subr.bf16.mxu0 0
    %146 = vmatpush1.bf16.xpose.msra.mxu0 0
    %147 = vmatprep.subr.bf16.mxu0 0
    %148 = vmatpush1.bf16.xpose.msra.mxu0 0
    %149 = vmatprep.subr.bf16.mxu0 0
    %150 = vmatpush1.bf16.xpose.msra.mxu0 0
    %151 = vmatprep.subr.bf16.mxu0 0
    %152 = vmatpush1.bf16.xpose.msra.mxu0 0
    %153 = vmatprep.mubr.bf16.mxu0 0
    %154 = vmatmul.mubr.bf16.gmra.mrb[0].mxu0 %v71
    %v155 = vpop.f32.mrb[0].mxu0
    %v156 = vadd.f32 0.0, %v155
    %v157 = vpop.f32.mrb[0].mxu0
    %v158 = vpop.f32.mrb[0].mxu0
    %v159 = vadd.f32 0.0, %v158
    %v160 = vpop.f32.mrb[0].mxu0
    %161 = vdwg.mxu0
    %v162 = vadd.f32 %v47, %v156
    %v163 = vadd.f32 %v48, %v159
    %164 = vst [vmem:[#allocation7] sm:$0xff] %v162
    %165 = vst [vmem:[#allocation7 + $0x8] sm:$0xff] %v163
    // Predicated region
    $region22: #{tpu_custom_call.1} parent=1 // pred_check
      _
    $region23: #{tpu_custom_call.1} parent=1 // pred_check_branch
      %167 = sbr.rel (0) target = $region25
    $region24: #{tpu_custom_call.1} parent=1 // pred_region
      %s169 = ssub.s32 256, 256
      %170 = vsyncadd [#allocation4], %s169
      %s171 = sshll.u32 [#allocation7], 4
      %s172 = int_to_ptr.vmem [resolvable:$true] %s171
      %177 = dma.vmem_to_hbm [thread:$0]  %s172, 256, %s2, [#allocation4], 128, 128, 8
    $region25: #{tpu_custom_call.1} parent=1 // pred_fallthru
      _
    // Predicated region
    $region26: #{tpu_custom_call.1} parent=1 // pred_check
      _
    $region27: #{tpu_custom_call.1} parent=1 // pred_check_branch
      %179 = sbr.rel (0) target = $region29
    $region28: #{tpu_custom_call.1} parent=1 // pred_region
      %180 = dma.done [#allocation4], 256
    $region29: #{tpu_custom_call.1} parent=1 // pred_fallthru
      _
    %181 = vsyncpa [#allocation3], 1
    %182 = vsyncpa [#allocation6], 1
    %183 = vsyncpa [#allocation4], 1

</llo_original>
